<compile_context>
chip_gen: v5e
topology: v5e:2x2
jax: 0.10.0
libtpu: 0.0.40
codegen_flags: <defaults>
</compile_context>

<pallas_src>
import jax
import jax.numpy as jnp
from jax.experimental import pallas as pl
from jax.experimental.pallas import tpu as pltpu

INPUT_SIZE = 512
HIDDEN_SIZE = 1024
OUTPUT_SIZE = 256
BN_EPS = 1e-5
TILE_H = 256  # hidden tile; multiple of 128 (MXU lane width)


def mlp_kernel(x_ref, w1_ref, gamma_ref, beta_ref, w2_ref, b2_ref, o_ref, acc_ref):
    k = pl.program_id(0)

    @pl.when(k == 0)
    def _():
        acc_ref[...] = jnp.zeros_like(acc_ref)

    # ---- Linear 1 tile: [B, In] @ [In, TILE_H] (bias cancelled by BN) ----
    h = jnp.dot(x_ref[...], w1_ref[...], preferred_element_type=jnp.float32)

    # ---- BatchNorm1d, train-mode batch statistics (biased variance) ----
    # Folded affine: one [1, TILE_H] scale/shift, single FMA on [B, TILE_H].
    mean = jnp.mean(h, axis=0, keepdims=True)                       # [1, TILE_H]
    var = jnp.mean(h * h, axis=0, keepdims=True) - mean * mean
    var = jnp.maximum(var, 0.0)
    scale = gamma_ref[...] * jax.lax.rsqrt(var + BN_EPS)            # [1, TILE_H]
    shift = beta_ref[...] - mean * scale                            # [1, TILE_H]

    # ---- BN affine + ReLU ----
    h = jnp.maximum(h * scale + shift, 0.0)

    # ---- Linear 2 partial product, accumulated over hidden tiles ----
    acc_ref[...] += jnp.dot(h, w2_ref[...], preferred_element_type=jnp.float32)

    @pl.when(k == pl.num_programs(0) - 1)
    def _():
        o_ref[...] = acc_ref[...] + b2_ref[...]


def mlp_forward(x, w1, b1, gamma, beta, w2, b2, *, tile_h=TILE_H):
    """x: [B, INPUT_SIZE] f32.  w1: [In, H], w2: [H, Out] (pre-transposed)."""
    del b1  # exactly cancelled by train-mode BatchNorm mean subtraction
    assert HIDDEN_SIZE % tile_h == 0
    B = x.shape[0]
    num_h_tiles = HIDDEN_SIZE // tile_h

    gamma_2d = gamma.reshape(1, HIDDEN_SIZE)
    beta_2d = beta.reshape(1, HIDDEN_SIZE)
    b2_2d = b2.reshape(1, OUTPUT_SIZE)

    grid_spec = pltpu.PrefetchScalarGridSpec(
        num_scalar_prefetch=0,
        grid=(num_h_tiles,),
        in_specs=[
            pl.BlockSpec((B, INPUT_SIZE), lambda k: (0, 0)),        # x (resident)
            pl.BlockSpec((INPUT_SIZE, tile_h), lambda k: (0, k)),   # w1 tile
            pl.BlockSpec((1, tile_h), lambda k: (0, k)),            # gamma tile
            pl.BlockSpec((1, tile_h), lambda k: (0, k)),            # beta tile
            pl.BlockSpec((tile_h, OUTPUT_SIZE), lambda k: (k, 0)),  # w2 tile
            pl.BlockSpec((1, OUTPUT_SIZE), lambda k: (0, 0)),       # b2 (resident)
        ],
        out_specs=pl.BlockSpec((B, OUTPUT_SIZE), lambda k: (0, 0)),
        scratch_shapes=[pltpu.VMEM((B, OUTPUT_SIZE), jnp.float32)],
    )

    return pl.pallas_call(
        mlp_kernel,
        out_shape=jax.ShapeDtypeStruct((B, OUTPUT_SIZE), jnp.float32),
        grid_spec=grid_spec,
        compiler_params=pltpu.CompilerParams(
            dimension_semantics=("arbitrary",),  # reduction over hidden tiles
        ),
    )(x, w1, gamma_2d, beta_2d, w2, b2_2d)


def init_params(key):
    """Deterministic parameter init (PyTorch-like uniform fan-in bounds)."""
    k1, k2, k3, k4 = jax.random.split(key, 4)
    bound1 = 1.0 / (INPUT_SIZE ** 0.5)
    bound2 = 1.0 / (HIDDEN_SIZE ** 0.5)
    # Stored pre-transposed as [in, out] for the kernel.
    w1 = jax.random.uniform(k1, (INPUT_SIZE, HIDDEN_SIZE), jnp.float32, -bound1, bound1)
    b1 = jax.random.uniform(k2, (HIDDEN_SIZE,), jnp.float32, -bound1, bound1)
    gamma = jnp.ones((HIDDEN_SIZE,), jnp.float32)   # BatchNorm1d weight init
    beta = jnp.zeros((HIDDEN_SIZE,), jnp.float32)   # BatchNorm1d bias init
    w2 = jax.random.uniform(k3, (HIDDEN_SIZE, OUTPUT_SIZE), jnp.float32, -bound2, bound2)
    b2 = jax.random.uniform(k4, (OUTPUT_SIZE,), jnp.float32, -bound2, bound2)
    return w1, b1, gamma, beta, w2, b2


def mlp_reference(x, w1, b1, gamma, beta, w2, b2):
    h = x @ w1 + b1
    mean = jnp.mean(h, axis=0, keepdims=True)
    var = jnp.mean((h - mean) ** 2, axis=0, keepdims=True)
    h = (h - mean) / jnp.sqrt(var + BN_EPS)
    h = h * gamma + beta
    h = jnp.maximum(h, 0.0)
    return h @ w2 + b2


if __name__ == "__main__":
    key = jax.random.PRNGKey(0)
    kx, kp = jax.random.split(key)
    B = 8
    x = jax.random.normal(kx, (B, INPUT_SIZE), jnp.float32)
    params = init_params(kp)

    out = mlp_forward(x, *params)
    out = jax.block_until_ready(out)

    ref = mlp_reference(x, *params)
    assert out.shape == (B, OUTPUT_SIZE)
    assert jnp.allclose(out, ref, atol=1e-3, rtol=1e-3), "mismatch vs reference"

    print("KERNEL_OK")
</pallas_src>

<mosaic_0001>
module attributes {stable_mosaic.version = 11 : i64} {
  func.func @mlp_kernel(%arg0: i32, %arg1: memref<8x512xf32, #tpu.memory_space<vmem>>, %arg2: memref<512x256xf32, #tpu.memory_space<vmem>>, %arg3: memref<1x256xf32, #tpu.memory_space<vmem>>, %arg4: memref<1x256xf32, #tpu.memory_space<vmem>>, %arg5: memref<256x256xf32, #tpu.memory_space<vmem>>, %arg6: memref<1x256xf32, #tpu.memory_space<vmem>>, %arg7: memref<8x256xf32, #tpu.memory_space<vmem>>, %arg8: memref<8x256xf32, #tpu.memory_space<vmem>>) attributes {dimension_semantics = [#tpu.dimension_semantics<arbitrary>], iteration_bounds = array<i64: 4>, scalar_prefetch = 0 : i64, scratch_operands = 1 : i64, tpu.core_type = #tpu.core_type<tc>, window_params = [{pipeline_mode = #tpu.pipeline_mode<synchronous>, transform_indices = @transform_0, window_bounds = array<i64: 8, 512>}, {transform_indices = @transform_1, window_bounds = array<i64: 512, 256>}, {transform_indices = @transform_2, window_bounds = array<i64: 1, 256>}, {transform_indices = @transform_3, window_bounds = array<i64: 1, 256>}, {transform_indices = @transform_4, window_bounds = array<i64: 256, 256>}, {pipeline_mode = #tpu.pipeline_mode<synchronous>, transform_indices = @transform_5, window_bounds = array<i64: 1, 256>}, {pipeline_mode = #tpu.pipeline_mode<synchronous>, transform_indices = @transform_6, window_bounds = array<i64: 8, 256>}]} {
    %c0_i32 = arith.constant 0 : i32
    %0 = arith.cmpi eq, %arg0, %c0_i32 : i32
    %1 = arith.extui %0 : i1 to i32
    %c0_i32_0 = arith.constant 0 : i32
    %2 = arith.cmpi ne, %1, %c0_i32_0 : i32
    scf.if %2 {
      %cst_23 = arith.constant 0.000000e+00 : f32
      %41 = vector.broadcast %cst_23 : f32 to vector<8x256xf32>
      %c0_24 = arith.constant 0 : index
      %c0_25 = arith.constant 0 : index
      %42 = vector.load %arg8[%c0_24, %c0_25] : memref<8x256xf32, #tpu.memory_space<vmem>>, vector<8x256xf32>
      tpu.vector_store %arg8[%c0_24, %c0_25], %41 {strides = array<i32>} : memref<8x256xf32, #tpu.memory_space<vmem>>, vector<8x256xf32>,
    } else {
    }
    %c0 = arith.constant 0 : index
    %c0_1 = arith.constant 0 : index
    %3 = vector.load %arg1[%c0, %c0_1] : memref<8x512xf32, #tpu.memory_space<vmem>>, vector<8x512xf32>
    %c0_2 = arith.constant 0 : index
    %c0_3 = arith.constant 0 : index
    %4 = vector.load %arg2[%c0_2, %c0_3] : memref<512x256xf32, #tpu.memory_space<vmem>>, vector<512x256xf32>
    %cst = arith.constant dense<0.000000e+00> : vector<8x256xf32>
    %5 = tpu.matmul %3, %4, %cst {dimension_numbers = #tpu.dot_dimension_numbers<[1], [0], [0], [1], [0, 0, 1, 1], [], []>} : vector<8x512xf32>, vector<512x256xf32>, vector<8x256xf32> -> vector<8x256xf32>
    %cst_4 = arith.constant dense<0.000000e+00> : vector<256xf32>
    %6 = vector.multi_reduction <add>, %5, %cst_4 [0] : vector<8x256xf32> to vector<256xf32>
    %7 = vector.shape_cast %6 : vector<256xf32> to vector<1x256xf32>
    %cst_5 = arith.constant 8.000000e+00 : f32
    %8 = vector.broadcast %cst_5 : f32 to vector<1x256xf32>
    %9 = arith.divf %7, %8 : vector<1x256xf32>
    %10 = arith.mulf %5, %5 : vector<8x256xf32>
    %cst_6 = arith.constant dense<0.000000e+00> : vector<256xf32>
    %11 = vector.multi_reduction <add>, %10, %cst_6 [0] : vector<8x256xf32> to vector<256xf32>
    %12 = vector.shape_cast %11 : vector<256xf32> to vector<1x256xf32>
    %cst_7 = arith.constant 8.000000e+00 : f32
    %13 = vector.broadcast %cst_7 : f32 to vector<1x256xf32>
    %14 = arith.divf %12, %13 : vector<1x256xf32>
    %15 = arith.mulf %9, %9 : vector<1x256xf32>
    %16 = arith.subf %14, %15 : vector<1x256xf32>
    %cst_8 = arith.constant 0.000000e+00 : f32
    %17 = vector.broadcast %cst_8 : f32 to vector<1x256xf32>
    %18 = arith.maximumf %16, %17 : vector<1x256xf32>
    %c0_9 = arith.constant 0 : index
    %c0_10 = arith.constant 0 : index
    %19 = vector.load %arg3[%c0_9, %c0_10] : memref<1x256xf32, #tpu.memory_space<vmem>>, vector<1x256xf32>
    %cst_11 = arith.constant 9.99999974E-6 : f32
    %20 = vector.broadcast %cst_11 : f32 to vector<1x256xf32>
    %21 = arith.addf %18, %20 : vector<1x256xf32>
    %22 = math.rsqrt %21 : vector<1x256xf32>
    %23 = arith.mulf %19, %22 : vector<1x256xf32>
    %c0_12 = arith.constant 0 : index
    %c0_13 = arith.constant 0 : index
    %24 = vector.load %arg4[%c0_12, %c0_13] : memref<1x256xf32, #tpu.memory_space<vmem>>, vector<1x256xf32>
    %25 = arith.mulf %9, %23 : vector<1x256xf32>
    %26 = arith.subf %24, %25 : vector<1x256xf32>
    %27 = vector.broadcast %23 : vector<1x256xf32> to vector<8x256xf32>
    %28 = arith.mulf %5, %27 : vector<8x256xf32>
    %29 = vector.broadcast %26 : vector<1x256xf32> to vector<8x256xf32>
    %30 = arith.addf %28, %29 : vector<8x256xf32>
    %cst_14 = arith.constant 0.000000e+00 : f32
    %31 = vector.broadcast %cst_14 : f32 to vector<8x256xf32>
    %32 = arith.maximumf %30, %31 : vector<8x256xf32>
    %c0_15 = arith.constant 0 : index
    %c0_16 = arith.constant 0 : index
    %33 = vector.load %arg8[%c0_15, %c0_16] : memref<8x256xf32, #tpu.memory_space<vmem>>, vector<8x256xf32>
    %c0_17 = arith.constant 0 : index
    %c0_18 = arith.constant 0 : index
    %34 = vector.load %arg5[%c0_17, %c0_18] : memref<256x256xf32, #tpu.memory_space<vmem>>, vector<256x256xf32>
    %cst_19 = arith.constant dense<0.000000e+00> : vector<8x256xf32>
    %35 = tpu.matmul %32, %34, %cst_19 {dimension_numbers = #tpu.dot_dimension_numbers<[1], [0], [0], [1], [0, 0, 1, 1], [], []>} : vector<8x256xf32>, vector<256x256xf32>, vector<8x256xf32> -> vector<8x256xf32>
    %36 = arith.addf %33, %35 : vector<8x256xf32>
    %c0_20 = arith.constant 0 : index
    %c0_21 = arith.constant 0 : index
    %37 = vector.load %arg8[%c0_20, %c0_21] : memref<8x256xf32, #tpu.memory_space<vmem>>, vector<8x256xf32>
    tpu.vector_store %arg8[%c0_20, %c0_21], %36 {strides = array<i32>} : memref<8x256xf32, #tpu.memory_space<vmem>>, vector<8x256xf32>,
    %c3_i32 = arith.constant 3 : i32
    %38 = arith.cmpi eq, %arg0, %c3_i32 : i32
    %39 = arith.extui %38 : i1 to i32
    %c0_i32_22 = arith.constant 0 : i32
    %40 = arith.cmpi ne, %39, %c0_i32_22 : i32
    scf.if %40 {
      %c0_23 = arith.constant 0 : index
      %c0_24 = arith.constant 0 : index
      %41 = vector.load %arg8[%c0_23, %c0_24] : memref<8x256xf32, #tpu.memory_space<vmem>>, vector<8x256xf32>
      %c0_25 = arith.constant 0 : index
      %c0_26 = arith.constant 0 : index
      %42 = vector.load %arg6[%c0_25, %c0_26] : memref<1x256xf32, #tpu.memory_space<vmem>>, vector<1x256xf32>
      %43 = vector.broadcast %42 : vector<1x256xf32> to vector<8x256xf32>
      %44 = arith.addf %41, %43 : vector<8x256xf32>
      %c0_27 = arith.constant 0 : index
      %c0_28 = arith.constant 0 : index
      %45 = vector.load %arg7[%c0_27, %c0_28] : memref<8x256xf32, #tpu.memory_space<vmem>>, vector<8x256xf32>
      tpu.vector_store %arg7[%c0_27, %c0_28], %44 {strides = array<i32>} : memref<8x256xf32, #tpu.memory_space<vmem>>, vector<8x256xf32>,
    } else {
    }
    return
  }
  func.func @transform_0(%arg0: i32) -> (i32, i32) {
    %c0_i32 = arith.constant 0 : i32
    %c0_i32_0 = arith.constant 0 : i32
    %c0_i32_1 = arith.constant 0 : i32
    return %c0_i32, %c0_i32_0 : i32, i32
  }
  func.func @transform_1(%arg0: i32) -> (i32, i32) {
    %c0_i32 = arith.constant 0 : i32
    %c0_i32_0 = arith.constant 0 : i32
    return %c0_i32, %arg0 : i32, i32
  }
  func.func @transform_2(%arg0: i32) -> (i32, i32) {
    %c0_i32 = arith.constant 0 : i32
    %c0_i32_0 = arith.constant 0 : i32
    return %c0_i32, %arg0 : i32, i32
  }
  func.func @transform_3(%arg0: i32) -> (i32, i32) {
    %c0_i32 = arith.constant 0 : i32
    %c0_i32_0 = arith.constant 0 : i32
    return %c0_i32, %arg0 : i32, i32
  }
  func.func @transform_4(%arg0: i32) -> (i32, i32) {
    %c0_i32 = arith.constant 0 : i32
    %c0_i32_0 = arith.constant 0 : i32
    return %arg0, %c0_i32 : i32, i32
  }
  func.func @transform_5(%arg0: i32) -> (i32, i32) {
    %c0_i32 = arith.constant 0 : i32
    %c0_i32_0 = arith.constant 0 : i32
    %c0_i32_1 = arith.constant 0 : i32
    return %c0_i32, %c0_i32_0 : i32, i32
  }
  func.func @transform_6(%arg0: i32) -> (i32, i32) {
    %c0_i32 = arith.constant 0 : i32
    %c0_i32_0 = arith.constant 0 : i32
    %c0_i32_1 = arith.constant 0 : i32
    return %c0_i32, %c0_i32_0 : i32, i32
  }
}

</mosaic_0001>

<llo_original>
// kernel: tpu_custom_call.1
$region0: #{tpu_custom_call.1}
  #allocation0 [shape = 'u32[]', space=smem, size = 0x4, offset = 0x4, fixed_abs, tag = 'smem constant byte address 0x4 - core index']
  #allocation1 [shape = 'u32[72,128]{1,0:T(1,128)}', space=vmem, size = 0x9000, scoped, tag = 'internal scratch']
  #allocation2 [shape = 'f32[8,256]{1,0:T(8,128)}', space=vmem, size = 0x2000, scoped, tag = 'scratch operand']
  %s0 = inlined_call_operand.hbm [shape: f32[8,512], index: 0, kind: input, shape index: {}]
  %s1 = inlined_call_operand.hbm [shape: f32[512,1024], index: 1, kind: input, shape index: {}]
  %s2 = inlined_call_operand.hbm [shape: f32[1,1024], index: 2, kind: input, shape index: {}]
  %s3 = inlined_call_operand.hbm [shape: f32[1,1024], index: 3, kind: input, shape index: {}]
  %s4 = inlined_call_operand.hbm [shape: f32[1024,256], index: 4, kind: input, shape index: {}]
  %s5 = inlined_call_operand.hbm [shape: f32[1,256], index: 5, kind: input, shape index: {}]
  %s6 = inlined_call_operand.hbm [shape: f32[8,256], index: 6, kind: output, shape index: {}]
  %s7 = sld [smem:[#allocation0]]
  $region89: #{tpu_custom_call.1} parent=0
    _
  %s9 = ssub.s32 1, %s7
  %s10 = scalar_select 0, %s9, %s7
  $region1: #{tpu_custom_call.1} parent=0
    #allocation3 [shape = 'u8[16384]{0}', space=vmem, size = 0x4000, scoped, tag = 'input window, operand 0, single buffered']
    #allocation4 [shape = 's32[2]{0}', space=sflag, size = 0x8, scoped, tag = 'scoped memory for tpu_custom_call.1']
    #allocation5 [shape = 's32[2]{0}', space=sflag, size = 0x8, scoped, tag = 'scoped memory for tpu_custom_call.1']
    #allocation6 [shape = 'u8[1048576]{0}', space=vmem, size = 0x100000, scoped, tag = 'input window, operand 1']
    #allocation7 [shape = 's32[2]{0}', space=sflag, size = 0x8, scoped, tag = 'scoped memory for tpu_custom_call.1']
    #allocation8 [shape = 'u8[2048]{0}', space=vmem, size = 0x800, scoped, tag = 'input window, operand 2']
    #allocation9 [shape = 'u8[2048]{0}', space=vmem, size = 0x800, scoped, tag = 'input window, operand 3']
    #allocation10 [shape = 's32[2]{0}', space=sflag, size = 0x8, scoped, tag = 'scoped memory for tpu_custom_call.1']
    #allocation11 [shape = 'u8[524288]{0}', space=vmem, size = 0x80000, scoped, tag = 'input window, operand 4']
    #allocation12 [shape = 'u8[1024]{0}', space=vmem, size = 0x400, scoped, tag = 'input window, operand 5, single buffered']
    #allocation13 [shape = 's32[1]{0}', space=sflag, size = 0x4, scoped, tag = 'scoped memory for tpu_custom_call.1']
    #allocation14 [shape = 'u8[8192]{0}', space=vmem, size = 0x2000, scoped, tag = 'output window, operand 0, single buffered']
    %11 = vsyncpa [#allocation4], 0
    %12 = vsyncpa [#allocation7], 0
    %s13 = scalar_lea.sflag [#allocation7], 1
    %14 = vsyncpa %s13, 0
    %15 = vsyncpa [#allocation10], 0
    %s16 = scalar_lea.sflag [#allocation10], 1
    %17 = vsyncpa %s16, 0
    %18 = vsyncpa [#allocation13], 0
    %19 = vsyncpa [#allocation5], 0
    loop: start=0, step=1, limit=6
    $region2: #{tpu_custom_call.1} parent=1 // loop_pre_header
      _
    $region3: #{tpu_custom_call.1} parent=1 // loop_header
      %s21 = sphi 0, %s25
      %p22 = scmp.ge.s32.totalorder %s21, 6
      %s29 = sphi 0, %s29
      %s31 = sphi 0, %s29
      %s32 = sphi 0, %s31
      %s46 = sphi 0, %s32
      %s52 = sphi 0, %s54
      %s55 = sphi 0, %s52
      %s56 = sphi 0, %s55
      %s72 = sphi 0, %s56
      %s78 = sphi 0, %s80
      %s81 = sphi 0, %s78
      %s82 = sphi 0, %s81
      %s98 = sphi 0, %s82
      %s104 = sphi 0, %s106
      %s107 = sphi 0, %s104
      %s108 = sphi 0, %s107
      %s124 = sphi 0, %s108
      %s130 = sphi 0, %s132
      %s133 = sphi 0, %s130
      %s134 = sphi 0, %s133
      %s150 = sphi 0, %s134
      %s154 = sphi 0, %s154
      %s156 = sphi 0, %s154
      %s157 = sphi 0, %s156
      %s171 = sphi 0, %s157
      %s175 = sphi 0, %s175
      %s177 = sphi 0, %s175
      %s178 = sphi 0, %s177
      %s192 = sphi 0, %s178
    $region4: #{tpu_custom_call.1} parent=1 // loop_header_branch
      %24 = sbr.rel (%p22) target = $region8
    $region5: #{tpu_custom_call.1} parent=1 // loop_body
      %s26 = ssub.s32 %s21, 1
      %s27 = ssub.s32 %s21, 2
      %s28 = sadd.s32 %s21, 1
      %s30 = sadd.s32 %s29, 1
      %p33 = scmp.eq.s32.totalorder %s21, 3
      %p34 = scmp.ne.s32.totalorder %s29, %s31
      %p35 = scmp.eq.s32.totalorder %s21, 0
      %p36 = por %p34, %p35
      %p37 = scmp.ne.s32.totalorder %s29, %s31
      %p38 = scmp.eq.s32.totalorder %s26, 3
      %p39 = por %p37, %p38
      %p40 = scmp.ne.s32.totalorder %s31, %s32
      %p41 = scmp.eq.s32.totalorder %s26, 0
      %p42 = por %p40, %p41
      %p43 = scmp.ne.s32.totalorder %s31, %s32
      %p44 = scmp.eq.s32.totalorder %s27, 3
      %p45 = por %p43, %p44
      %p47 = scmp.ne.s32.totalorder %s32, %s46
      %p48 = scmp.eq.s32.totalorder %s27, 0
      %p49 = por %p47, %p48
      %s50 = ssub.s32 %s21, %s28
      %p51 = scmp.eq.s32.totalorder %s50, 0
      %s53 = sadd.s32 %s52, 1
      %s54 = scalar_select %p51, %s52, %s53
      %p57 = pneg %p51
      %p58 = scmp.eq.s32.totalorder %s21, 3
      %p59 = por %p57, %p58
      %p60 = scmp.ne.s32.totalorder %s52, %s55
      %p61 = scmp.eq.s32.totalorder %s21, 0
      %p62 = por %p60, %p61
      %p63 = scmp.ne.s32.totalorder %s52, %s55
      %p64 = scmp.eq.s32.totalorder %s26, 3
      %p65 = por %p63, %p64
      %p66 = scmp.ne.s32.totalorder %s55, %s56
      %p67 = scmp.eq.s32.totalorder %s26, 0
      %p68 = por %p66, %p67
      %p69 = scmp.ne.s32.totalorder %s55, %s56
      %p70 = scmp.eq.s32.totalorder %s27, 3
      %p71 = por %p69, %p70
      %p73 = scmp.ne.s32.totalorder %s56, %s72
      %p74 = scmp.eq.s32.totalorder %s27, 0
      %p75 = por %p73, %p74
      %s76 = ssub.s32 %s21, %s28
      %p77 = scmp.eq.s32.totalorder %s76, 0
      %s79 = sadd.s32 %s78, 1
      %s80 = scalar_select %p77, %s78, %s79
      %p83 = pneg %p77
      %p84 = scmp.eq.s32.totalorder %s21, 3
      %p85 = por %p83, %p84
      %p86 = scmp.ne.s32.totalorder %s78, %s81
      %p87 = scmp.eq.s32.totalorder %s21, 0
      %p88 = por %p86, %p87
      %p89 = scmp.ne.s32.totalorder %s78, %s81
      %p90 = scmp.eq.s32.totalorder %s26, 3
      %p91 = por %p89, %p90
      %p92 = scmp.ne.s32.totalorder %s81, %s82
      %p93 = scmp.eq.s32.totalorder %s26, 0
      %p94 = por %p92, %p93
      %p95 = scmp.ne.s32.totalorder %s81, %s82
      %p96 = scmp.eq.s32.totalorder %s27, 3
      %p97 = por %p95, %p96
      %p99 = scmp.ne.s32.totalorder %s82, %s98
      %p100 = scmp.eq.s32.totalorder %s27, 0
      %p101 = por %p99, %p100
      %s102 = ssub.s32 %s21, %s28
      %p103 = scmp.eq.s32.totalorder %s102, 0
      %s105 = sadd.s32 %s104, 1
      %s106 = scalar_select %p103, %s104, %s105
      %p109 = pneg %p103
      %p110 = scmp.eq.s32.totalorder %s21, 3
      %p111 = por %p109, %p110
      %p112 = scmp.ne.s32.totalorder %s104, %s107
      %p113 = scmp.eq.s32.totalorder %s21, 0
      %p114 = por %p112, %p113
      %p115 = scmp.ne.s32.totalorder %s104, %s107
      %p116 = scmp.eq.s32.totalorder %s26, 3
      %p117 = por %p115, %p116
      %p118 = scmp.ne.s32.totalorder %s107, %s108
      %p119 = scmp.eq.s32.totalorder %s26, 0
      %p120 = por %p118, %p119
      %p121 = scmp.ne.s32.totalorder %s107, %s108
      %p122 = scmp.eq.s32.totalorder %s27, 3
      %p123 = por %p121, %p122
      %p125 = scmp.ne.s32.totalorder %s108, %s124
      %p126 = scmp.eq.s32.totalorder %s27, 0
      %p127 = por %p125, %p126
      %s128 = ssub.s32 %s21, %s28
      %p129 = scmp.eq.s32.totalorder %s128, 0
      %s131 = sadd.s32 %s130, 1
      %s132 = scalar_select %p129, %s130, %s131
      %p135 = pneg %p129
      %p136 = scmp.eq.s32.totalorder %s21, 3
      %p137 = por %p135, %p136
      %p138 = scmp.ne.s32.totalorder %s130, %s133
      %p139 = scmp.eq.s32.totalorder %s21, 0
      %p140 = por %p138, %p139
      %p141 = scmp.ne.s32.totalorder %s130, %s133
      %p142 = scmp.eq.s32.totalorder %s26, 3
      %p143 = por %p141, %p142
      %p144 = scmp.ne.s32.totalorder %s133, %s134
      %p145 = scmp.eq.s32.totalorder %s26, 0
      %p146 = por %p144, %p145
      %p147 = scmp.ne.s32.totalorder %s133, %s134
      %p148 = scmp.eq.s32.totalorder %s27, 3
      %p149 = por %p147, %p148
      %p151 = scmp.ne.s32.totalorder %s134, %s150
      %p152 = scmp.eq.s32.totalorder %s27, 0
      %p153 = por %p151, %p152
      %s155 = sadd.s32 %s154, 1
      %p158 = scmp.eq.s32.totalorder %s21, 3
      %p159 = scmp.ne.s32.totalorder %s154, %s156
      %p160 = scmp.eq.s32.totalorder %s21, 0
      %p161 = por %p159, %p160
      %p162 = scmp.ne.s32.totalorder %s154, %s156
      %p163 = scmp.eq.s32.totalorder %s26, 3
      %p164 = por %p162, %p163
      %p165 = scmp.ne.s32.totalorder %s156, %s157
      %p166 = scmp.eq.s32.totalorder %s26, 0
      %p167 = por %p165, %p166
      %p168 = scmp.ne.s32.totalorder %s156, %s157
      %p169 = scmp.eq.s32.totalorder %s27, 3
      %p170 = por %p168, %p169
      %p172 = scmp.ne.s32.totalorder %s157, %s171
      %p173 = scmp.eq.s32.totalorder %s27, 0
      %p174 = por %p172, %p173
      %s176 = sadd.s32 %s175, 1
      %p179 = scmp.eq.s32.totalorder %s21, 3
      %p180 = scmp.ne.s32.totalorder %s175, %s177
      %p181 = scmp.eq.s32.totalorder %s21, 0
      %p182 = por %p180, %p181
      %p183 = scmp.ne.s32.totalorder %s175, %s177
      %p184 = scmp.eq.s32.totalorder %s26, 3
      %p185 = por %p183, %p184
      %p186 = scmp.ne.s32.totalorder %s177, %s178
      %p187 = scmp.eq.s32.totalorder %s26, 0
      %p188 = por %p186, %p187
      %p189 = scmp.ne.s32.totalorder %s177, %s178
      %p190 = scmp.eq.s32.totalorder %s27, 3
      %p191 = por %p189, %p190
      %p193 = scmp.ne.s32.totalorder %s178, %s192
      %p194 = scmp.eq.s32.totalorder %s27, 0
      %p195 = por %p193, %p194
      %p196 = scmp.le.s32.totalorder 1, %s21
      %p197 = scmp.lt.s32.totalorder %s21, 5
      %p198 = pnand %p196, %p197
      %p199 = pneg %p198
      // Predicated region
      $region9: #{tpu_custom_call.1} parent=5 // pred_check
        _
      $region10: #{tpu_custom_call.1} parent=5 // pred_check_branch
        %201 = sbr.rel (%p198) target = $region12
      $region11: #{tpu_custom_call.1} parent=5 // pred_region
        %s202 = ssub.s32 %s21, 1
        // Predicated region
        $region13: #{tpu_custom_call.1} parent=11 // pred_check
          %p203 = pneg %p42
        $region14: #{tpu_custom_call.1} parent=11 // pred_check_branch
          %205 = sbr.rel (%p203) target = $region16
        $region15: #{tpu_custom_call.1} parent=11 // pred_region
          %207 = vsyncadd [#allocation4], 0
          %s209 = sshll.u32 %s0, 4
          %s210 = int_to_ptr.hbm [resolvable:$true] %s209
          %s211 = sshll.u32 [#allocation3], 4
          %s212 = int_to_ptr.vmem [resolvable:$true] %s211
          %214 = dma.hbm_to_vmem [thread:$0]  %s210, 512, %s212, [#allocation4]
        $region16: #{tpu_custom_call.1} parent=11 // pred_fallthru
          _
        // Predicated region
        $region17: #{tpu_custom_call.1} parent=11 // pred_check
          %p215 = pneg %p167
        $region18: #{tpu_custom_call.1} parent=11 // pred_check_branch
          %217 = sbr.rel (%p215) target = $region20
        $region19: #{tpu_custom_call.1} parent=11 // pred_region
          %219 = vsyncadd [#allocation13], 0
          %s221 = sshll.u32 %s5, 4
          %s222 = int_to_ptr.hbm [resolvable:$true] %s221
          %s223 = sshll.u32 [#allocation12], 4
          %s224 = int_to_ptr.vmem [resolvable:$true] %s223
          %226 = dma.hbm_to_vmem [thread:$0]  %s222, 32, %s224, [#allocation13]
        $region20: #{tpu_custom_call.1} parent=11 // pred_fallthru
          _
      $region12: #{tpu_custom_call.1} parent=5 // pred_fallthru
        _
      %p227 = scmp.lt.s32.totalorder %s21, 4
      // Predicated region
      $region21: #{tpu_custom_call.1} parent=5 // pred_check
        %p228 = pneg %p227
      $region22: #{tpu_custom_call.1} parent=5 // pred_check_branch
        %230 = sbr.rel (%p228) target = $region24
      $region23: #{tpu_custom_call.1} parent=5 // pred_region
        // Predicated region
        $region25: #{tpu_custom_call.1} parent=23 // pred_check
          %p231 = pneg %p62
        $region26: #{tpu_custom_call.1} parent=23 // pred_check_branch
          %233 = sbr.rel (%p231) target = $region28
        $region27: #{tpu_custom_call.1} parent=23 // pred_region
          %s234 = sand.u32 %s21, 1
          %s235 = scalar_lea.sflag [#allocation7], %s234
          %s236 = sand.u32 %s52, 1
          %s237 = smul.addr %s236, 1024
          %s238 = scalar_lea.vmem [#allocation6], %s237
          %s239 = smul.u32 2, %s21
          %241 = vsyncadd %s235, 0
          %s242 = smul.addr %s239, 8
          %s243 = scalar_lea.hbm %s1, %s242
          %s244 = sshll.u32 %s243, 4
          %s245 = int_to_ptr.hbm [resolvable:$true] %s244
          %s246 = sshll.u32 %s238, 4
          %s247 = int_to_ptr.vmem [resolvable:$true] %s246
          %252 = dma.hbm_to_vmem [thread:$0]  %s245, 16384, %s247, %s235, 1024, 256, 16
        $region28: #{tpu_custom_call.1} parent=23 // pred_fallthru
          _
        // Predicated region
        $region29: #{tpu_custom_call.1} parent=23 // pred_check
          %p253 = pneg %p88
        $region30: #{tpu_custom_call.1} parent=23 // pred_check_branch
          %255 = sbr.rel (%p253) target = $region32
        $region31: #{tpu_custom_call.1} parent=23 // pred_region
          %s256 = sand.u32 %s21, 1
          %s257 = scalar_lea.sflag [#allocation7], %s256
          %s258 = sand.u32 %s78, 1
          %s259 = smul.addr %s258, 2
          %s260 = scalar_lea.vmem [#allocation8], %s259
          %s261 = smul.u32 2, %s21
          %263 = vsyncadd %s257, 0
          %s264 = scalar_lea.hbm %s2, %s261
          %s266 = sshll.u32 %s264, 4
          %s267 = int_to_ptr.hbm [resolvable:$true] %s266
          %s268 = sshll.u32 %s260, 4
          %s269 = int_to_ptr.vmem [resolvable:$true] %s268
          %271 = dma.hbm_to_vmem [thread:$0]  %s267, 32, %s269, %s257
        $region32: #{tpu_custom_call.1} parent=23 // pred_fallthru
          _
        // Predicated region
        $region33: #{tpu_custom_call.1} parent=23 // pred_check
          %p272 = pneg %p114
        $region34: #{tpu_custom_call.1} parent=23 // pred_check_branch
          %274 = sbr.rel (%p272) target = $region36
        $region35: #{tpu_custom_call.1} parent=23 // pred_region
          %s275 = sand.u32 %s21, 1
          %s276 = scalar_lea.sflag [#allocation10], %s275
          %s277 = sand.u32 %s104, 1
          %s278 = smul.addr %s277, 2
          %s279 = scalar_lea.vmem [#allocation9], %s278
          %s280 = smul.u32 2, %s21
          %282 = vsyncadd %s276, 0
          %s283 = scalar_lea.hbm %s3, %s280
          %s285 = sshll.u32 %s283, 4
          %s286 = int_to_ptr.hbm [resolvable:$true] %s285
          %s287 = sshll.u32 %s279, 4
          %s288 = int_to_ptr.vmem [resolvable:$true] %s287
          %290 = dma.hbm_to_vmem [thread:$0]  %s286, 32, %s288, %s276
        $region36: #{tpu_custom_call.1} parent=23 // pred_fallthru
          _
        // Predicated region
        $region37: #{tpu_custom_call.1} parent=23 // pred_check
          %p291 = pneg %p140
        $region38: #{tpu_custom_call.1} parent=23 // pred_check_branch
          %293 = sbr.rel (%p291) target = $region40
        $region39: #{tpu_custom_call.1} parent=23 // pred_region
          %s294 = sand.u32 %s21, 1
          %s295 = scalar_lea.sflag [#allocation10], %s294
          %s296 = sand.u32 %s130, 1
          %s297 = smul.addr %s296, 512
          %s298 = scalar_lea.vmem [#allocation11], %s297
          %s299 = smul.u32 32, %s21
          %301 = vsyncadd %s295, 0
          %s302 = smul.addr %s299, 2
          %s303 = smul.addr %s302, 8
          %s304 = scalar_lea.hbm %s4, %s303
          %s305 = sshll.u32 %s304, 4
          %s306 = int_to_ptr.hbm [resolvable:$true] %s305
          %s307 = sshll.u32 %s298, 4
          %s308 = int_to_ptr.vmem [resolvable:$true] %s307
          %313 = dma.hbm_to_vmem [thread:$0]  %s306, 8192, %s308, %s295, 256, 256, 16
        $region40: #{tpu_custom_call.1} parent=23 // pred_fallthru
          _
      $region24: #{tpu_custom_call.1} parent=5 // pred_fallthru
        _
      %p314 = scmp.le.s32.totalorder 1, %s21
      %p315 = scmp.lt.s32.totalorder %s21, 5
      %p316 = pnand %p314, %p315
      %p317 = pneg %p316
      // Predicated region
      $region41: #{tpu_custom_call.1} parent=5 // pred_check
        _
      $region42: #{tpu_custom_call.1} parent=5 // pred_check_branch
        %319 = sbr.rel (%p316) target = $region44
      $region43: #{tpu_custom_call.1} parent=5 // pred_region
        %s320 = ssub.s32 %s21, 1
        // Predicated region
        $region45: #{tpu_custom_call.1} parent=43 // pred_check
          %p321 = pneg %p42
        $region46: #{tpu_custom_call.1} parent=43 // pred_check_branch
          %323 = sbr.rel (%p321) target = $region48
        $region47: #{tpu_custom_call.1} parent=43 // pred_region
          %325 = dma.done [#allocation4], 512
        $region48: #{tpu_custom_call.1} parent=43 // pred_fallthru
          _
        %s326 = sand.u32 %s26, 1
        %s327 = scalar_lea.sflag [#allocation7], %s326
        %s328 = sand.u32 %s55, 1
        %s329 = smul.addr %s328, 1024
        %s330 = scalar_lea.vmem [#allocation6], %s329
        // Predicated region
        $region49: #{tpu_custom_call.1} parent=43 // pred_check
          %p331 = pneg %p68
        $region50: #{tpu_custom_call.1} parent=43 // pred_check_branch
          %333 = sbr.rel (%p331) target = $region52
        $region51: #{tpu_custom_call.1} parent=43 // pred_region
          %335 = dma.done %s327, 16384
        $region52: #{tpu_custom_call.1} parent=43 // pred_fallthru
          _
        %s336 = sand.u32 %s26, 1
        %s337 = scalar_lea.sflag [#allocation7], %s336
        %s338 = sand.u32 %s81, 1
        %s339 = smul.addr %s338, 2
        %s340 = scalar_lea.vmem [#allocation8], %s339
        // Predicated region
        $region53: #{tpu_custom_call.1} parent=43 // pred_check
          %p341 = pneg %p94
        $region54: #{tpu_custom_call.1} parent=43 // pred_check_branch
          %343 = sbr.rel (%p341) target = $region56
        $region55: #{tpu_custom_call.1} parent=43 // pred_region
          %345 = dma.done %s337, 32
        $region56: #{tpu_custom_call.1} parent=43 // pred_fallthru
          _
        %s346 = sand.u32 %s26, 1
        %s347 = scalar_lea.sflag [#allocation10], %s346
        %s348 = sand.u32 %s107, 1
        %s349 = smul.addr %s348, 2
        %s350 = scalar_lea.vmem [#allocation9], %s349
        // Predicated region
        $region57: #{tpu_custom_call.1} parent=43 // pred_check
          %p351 = pneg %p120
        $region58: #{tpu_custom_call.1} parent=43 // pred_check_branch
          %353 = sbr.rel (%p351) target = $region60
        $region59: #{tpu_custom_call.1} parent=43 // pred_region
          %355 = dma.done %s347, 32
        $region60: #{tpu_custom_call.1} parent=43 // pred_fallthru
          _
        %s356 = sand.u32 %s26, 1
        %s357 = scalar_lea.sflag [#allocation10], %s356
        %s358 = sand.u32 %s133, 1
        %s359 = smul.addr %s358, 512
        %s360 = scalar_lea.vmem [#allocation11], %s359
        // Predicated region
        $region61: #{tpu_custom_call.1} parent=43 // pred_check
          %p361 = pneg %p146
        $region62: #{tpu_custom_call.1} parent=43 // pred_check_branch
          %363 = sbr.rel (%p361) target = $region64
        $region63: #{tpu_custom_call.1} parent=43 // pred_region
          %365 = dma.done %s357, 8192
        $region64: #{tpu_custom_call.1} parent=43 // pred_fallthru
          _
        // Predicated region
        $region65: #{tpu_custom_call.1} parent=43 // pred_check
          %p366 = pneg %p167
        $region66: #{tpu_custom_call.1} parent=43 // pred_check_branch
          %368 = sbr.rel (%p366) target = $region68
        $region67: #{tpu_custom_call.1} parent=43 // pred_region
          %370 = dma.done [#allocation13], 32
        $region68: #{tpu_custom_call.1} parent=43 // pred_fallthru
          _
        %p371 = pneg %p42
        %p372 = pneg %p39
        %s373 = sand.u32 %s26, 1
        %s374 = scalar_lea.sflag [#allocation7], %s373
        %s375 = sand.u32 %s55, 1
        %s376 = smul.addr %s375, 1024
        %s377 = scalar_lea.vmem [#allocation6], %s376
        %p378 = pneg %p68
        %p379 = pneg %p65
        %s380 = sand.u32 %s26, 1
        %s381 = scalar_lea.sflag [#allocation7], %s380
        %s382 = sand.u32 %s81, 1
        %s383 = smul.addr %s382, 2
        %s384 = scalar_lea.vmem [#allocation8], %s383
        %p385 = pneg %p94
        %p386 = pneg %p91
        %s387 = sand.u32 %s26, 1
        %s388 = scalar_lea.sflag [#allocation10], %s387
        %s389 = sand.u32 %s107, 1
        %s390 = smul.addr %s389, 2
        %s391 = scalar_lea.vmem [#allocation9], %s390
        %p392 = pneg %p120
        %p393 = pneg %p117
        %s394 = sand.u32 %s26, 1
        %s395 = scalar_lea.sflag [#allocation10], %s394
        %s396 = sand.u32 %s133, 1
        %s397 = smul.addr %s396, 512
        %s398 = scalar_lea.vmem [#allocation11], %s397
        %p399 = pneg %p146
        %p400 = pneg %p143
        %p401 = pneg %p167
        %p402 = pneg %p164
        %p403 = pneg %p188
        %p404 = pneg %p185
        %s405 = smul.u32 2, %s26
        %s406 = smul.u32 2, %s26
        %s407 = smul.u32 2, %s26
        %s408 = smul.u32 32, %s26
        %p409 = scmp.eq.s32.totalorder %s26, 0
        // Predicated region
        $region69: #{tpu_custom_call.1} parent=43 // pred_check
          %p410 = pneg %p409
        $region70: #{tpu_custom_call.1} parent=43 // pred_check_branch
          %412 = sbr.rel (%p410) target = $region72
        $region71: #{tpu_custom_call.1} parent=43 // pred_region
          %413 = vst [vmem:[#allocation2] sm:$0xff] 0.0
          %414 = vst [vmem:[#allocation2 + $0x8] sm:$0xff] 0.0
        $region72: #{tpu_custom_call.1} parent=43 // pred_fallthru
          _
        %v415 = vld [vmem:[#allocation3] sm:$0xff]
        %v416 = vld [vmem:[#allocation3 + $0x8] sm:$0xff]
        %v417 = vld [vmem:[#allocation3 + $0x10] sm:$0xff]
        %v418 = vld [vmem:[#allocation3 + $0x18] sm:$0xff]
        %v419 = vld [vmem:[%s330] sm:$0xff]
        %v420 = vld [vmem:[%s330 + $0x8] sm:$0xff]
        %v421 = vld [vmem:[%s330 + $0x10] sm:$0xff]
        %v422 = vld [vmem:[%s330 + $0x18] sm:$0xff]
        %v423 = vld [vmem:[%s330 + $0x20] sm:$0xff]
        %v424 = vld [vmem:[%s330 + $0x28] sm:$0xff]
        %v425 = vld [vmem:[%s330 + $0x30] sm:$0xff]
        %v426 = vld [vmem:[%s330 + $0x38] sm:$0xff]
        %v427 = vld [vmem:[%s330 + $0x40] sm:$0xff]
        %v428 = vld [vmem:[%s330 + $0x48] sm:$0xff]
        %v429 = vld [vmem:[%s330 + $0x50] sm:$0xff]
        %v430 = vld [vmem:[%s330 + $0x58] sm:$0xff]
        %v431 = vld [vmem:[%s330 + $0x60] sm:$0xff]
        %v432 = vld [vmem:[%s330 + $0x68] sm:$0xff]
        %v433 = vld [vmem:[%s330 + $0x70] sm:$0xff]
        %v434 = vld [vmem:[%s330 + $0x78] sm:$0xff]
        %v435 = vld [vmem:[%s330 + $0x80] sm:$0xff]
        %v436 = vld [vmem:[%s330 + $0x88] sm:$0xff]
        %v437 = vld [vmem:[%s330 + $0x90] sm:$0xff]
        %v438 = vld [vmem:[%s330 + $0x98] sm:$0xff]
        %v439 = vld [vmem:[%s330 + $0xa0] sm:$0xff]
        %v440 = vld [vmem:[%s330 + $0xa8] sm:$0xff]
        %v441 = vld [vmem:[%s330 + $0xb0] sm:$0xff]
        %v442 = vld [vmem:[%s330 + $0xb8] sm:$0xff]
        %v443 = vld [vmem:[%s330 + $0xc0] sm:$0xff]
        %v444 = vld [vmem:[%s330 + $0xc8] sm:$0xff]
        %v445 = vld [vmem:[%s330 + $0xd0] sm:$0xff]
        %v446 = vld [vmem:[%s330 + $0xd8] sm:$0xff]
        %v447 = vld [vmem:[%s330 + $0xe0] sm:$0xff]
        %v448 = vld [vmem:[%s330 + $0xe8] sm:$0xff]
        %v449 = vld [vmem:[%s330 + $0xf0] sm:$0xff]
        %v450 = vld [vmem:[%s330 + $0xf8] sm:$0xff]
        %v451 = vld [vmem:[%s330 + $0x100] sm:$0xff]
        %v452 = vld [vmem:[%s330 + $0x108] sm:$0xff]
        %v453 = vld [vmem:[%s330 + $0x110] sm:$0xff]
        %v454 = vld [vmem:[%s330 + $0x118] sm:$0xff]
        %v455 = vld [vmem:[%s330 + $0x120] sm:$0xff]
        %v456 = vld [vmem:[%s330 + $0x128] sm:$0xff]
        %v457 = vld [vmem:[%s330 + $0x130] sm:$0xff]
        %v458 = vld [vmem:[%s330 + $0x138] sm:$0xff]
        %v459 = vld [vmem:[%s330 + $0x140] sm:$0xff]
        %v460 = vld [vmem:[%s330 + $0x148] sm:$0xff]
        %v461 = vld [vmem:[%s330 + $0x150] sm:$0xff]
        %v462 = vld [vmem:[%s330 + $0x158] sm:$0xff]
        %v463 = vld [vmem:[%s330 + $0x160] sm:$0xff]
        %v464 = vld [vmem:[%s330 + $0x168] sm:$0xff]
        %v465 = vld [vmem:[%s330 + $0x170] sm:$0xff]
        %v466 = vld [vmem:[%s330 + $0x178] sm:$0xff]
        %v467 = vld [vmem:[%s330 + $0x180] sm:$0xff]
        %v468 = vld [vmem:[%s330 + $0x188] sm:$0xff]
        %v469 = vld [vmem:[%s330 + $0x190] sm:$0xff]
        %v470 = vld [vmem:[%s330 + $0x198] sm:$0xff]
        %v471 = vld [vmem:[%s330 + $0x1a0] sm:$0xff]
        %v472 = vld [vmem:[%s330 + $0x1a8] sm:$0xff]
        %v473 = vld [vmem:[%s330 + $0x1b0] sm:$0xff]
        %v474 = vld [vmem:[%s330 + $0x1b8] sm:$0xff]
        %v475 = vld [vmem:[%s330 + $0x1c0] sm:$0xff]
        %v476 = vld [vmem:[%s330 + $0x1c8] sm:$0xff]
        %v477 = vld [vmem:[%s330 + $0x1d0] sm:$0xff]
        %v478 = vld [vmem:[%s330 + $0x1d8] sm:$0xff]
        %v479 = vld [vmem:[%s330 + $0x1e0] sm:$0xff]
        %v480 = vld [vmem:[%s330 + $0x1e8] sm:$0xff]
        %v481 = vld [vmem:[%s330 + $0x1f0] sm:$0xff]
        %v482 = vld [vmem:[%s330 + $0x1f8] sm:$0xff]
        %v483 = vld [vmem:[%s330 + $0x200] sm:$0xff]
        %v484 = vld [vmem:[%s330 + $0x208] sm:$0xff]
        %v485 = vld [vmem:[%s330 + $0x210] sm:$0xff]
        %v486 = vld [vmem:[%s330 + $0x218] sm:$0xff]
        %v487 = vld [vmem:[%s330 + $0x220] sm:$0xff]
        %v488 = vld [vmem:[%s330 + $0x228] sm:$0xff]
        %v489 = vld [vmem:[%s330 + $0x230] sm:$0xff]
        %v490 = vld [vmem:[%s330 + $0x238] sm:$0xff]
        %v491 = vld [vmem:[%s330 + $0x240] sm:$0xff]
        %v492 = vld [vmem:[%s330 + $0x248] sm:$0xff]
        %v493 = vld [vmem:[%s330 + $0x250] sm:$0xff]
        %v494 = vld [vmem:[%s330 + $0x258] sm:$0xff]
        %v495 = vld [vmem:[%s330 + $0x260] sm:$0xff]
        %v496 = vld [vmem:[%s330 + $0x268] sm:$0xff]
        %v497 = vld [vmem:[%s330 + $0x270] sm:$0xff]
        %v498 = vld [vmem:[%s330 + $0x278] sm:$0xff]
        %v499 = vld [vmem:[%s330 + $0x280] sm:$0xff]
        %v500 = vld [vmem:[%s330 + $0x288] sm:$0xff]
        %v501 = vld [vmem:[%s330 + $0x290] sm:$0xff]
        %v502 = vld [vmem:[%s330 + $0x298] sm:$0xff]
        %v503 = vld [vmem:[%s330 + $0x2a0] sm:$0xff]
        %v504 = vld [vmem:[%s330 + $0x2a8] sm:$0xff]
        %v505 = vld [vmem:[%s330 + $0x2b0] sm:$0xff]
        %v506 = vld [vmem:[%s330 + $0x2b8] sm:$0xff]
        %v507 = vld [vmem:[%s330 + $0x2c0] sm:$0xff]
        %v508 = vld [vmem:[%s330 + $0x2c8] sm:$0xff]
        %v509 = vld [vmem:[%s330 + $0x2d0] sm:$0xff]
        %v510 = vld [vmem:[%s330 + $0x2d8] sm:$0xff]
        %v511 = vld [vmem:[%s330 + $0x2e0] sm:$0xff]
        %v512 = vld [vmem:[%s330 + $0x2e8] sm:$0xff]
        %v513 = vld [vmem:[%s330 + $0x2f0] sm:$0xff]
        %v514 = vld [vmem:[%s330 + $0x2f8] sm:$0xff]
        %v515 = vld [vmem:[%s330 + $0x300] sm:$0xff]
        %v516 = vld [vmem:[%s330 + $0x308] sm:$0xff]
        %v517 = vld [vmem:[%s330 + $0x310] sm:$0xff]
        %v518 = vld [vmem:[%s330 + $0x318] sm:$0xff]
        %v519 = vld [vmem:[%s330 + $0x320] sm:$0xff]
        %v520 = vld [vmem:[%s330 + $0x328] sm:$0xff]
        %v521 = vld [vmem:[%s330 + $0x330] sm:$0xff]
        %v522 = vld [vmem:[%s330 + $0x338] sm:$0xff]
        %v523 = vld [vmem:[%s330 + $0x340] sm:$0xff]
        %v524 = vld [vmem:[%s330 + $0x348] sm:$0xff]
        %v525 = vld [vmem:[%s330 + $0x350] sm:$0xff]
        %v526 = vld [vmem:[%s330 + $0x358] sm:$0xff]
        %v527 = vld [vmem:[%s330 + $0x360] sm:$0xff]
        %v528 = vld [vmem:[%s330 + $0x368] sm:$0xff]
        %v529 = vld [vmem:[%s330 + $0x370] sm:$0xff]
        %v530 = vld [vmem:[%s330 + $0x378] sm:$0xff]
        %v531 = vld [vmem:[%s330 + $0x380] sm:$0xff]
        %v532 = vld [vmem:[%s330 + $0x388] sm:$0xff]
        %v533 = vld [vmem:[%s330 + $0x390] sm:$0xff]
        %v534 = vld [vmem:[%s330 + $0x398] sm:$0xff]
        %v535 = vld [vmem:[%s330 + $0x3a0] sm:$0xff]
        %v536 = vld [vmem:[%s330 + $0x3a8] sm:$0xff]
        %v537 = vld [vmem:[%s330 + $0x3b0] sm:$0xff]
        %v538 = vld [vmem:[%s330 + $0x3b8] sm:$0xff]
        %v539 = vld [vmem:[%s330 + $0x3c0] sm:$0xff]
        %v540 = vld [vmem:[%s330 + $0x3c8] sm:$0xff]
        %v541 = vld [vmem:[%s330 + $0x3d0] sm:$0xff]
        %v542 = vld [vmem:[%s330 + $0x3d8] sm:$0xff]
        %v543 = vld [vmem:[%s330 + $0x3e0] sm:$0xff]
        %v544 = vld [vmem:[%s330 + $0x3e8] sm:$0xff]
        %v545 = vld [vmem:[%s330 + $0x3f0] sm:$0xff]
        %v546 = vld [vmem:[%s330 + $0x3f8] sm:$0xff]
        %547 = vmatpush.msra.mxu0 %v449
        %548 = vmatpush.msra.mxu0 %v447
        %549 = vmatpush.msra.mxu0 %v445
        %550 = vmatpush.msra.mxu0 %v443
        %551 = vmatpush.msra.mxu0 %v441
        %552 = vmatpush.msra.mxu0 %v439
        %553 = vmatpush.msra.mxu0 %v437
        %554 = vmatpush.msra.mxu0 %v435
        %555 = vmatpush.msra.mxu0 %v433
        %556 = vmatpush.msra.mxu0 %v431
        %557 = vmatpush.msra.mxu0 %v429
        %558 = vmatpush.msra.mxu0 %v427
        %559 = vmatpush.msra.mxu0 %v425
        %560 = vmatpush.msra.mxu0 %v423
        %561 = vmatpush.msra.mxu0 %v421
        %562 = vmatpush.msra.mxu0 %v419
        %563 = vmatmul.f32.gmra.mxu0 %v415
        %v564 = vpop.f32.mrf.mxu0
        %v565 = vadd.f32 0.0, %v564
        %566 = vdwg.mxu0
        %567 = vmatpush.msra.mxu0 %v481
        %568 = vmatpush.msra.mxu0 %v479
        %569 = vmatpush.msra.mxu0 %v477
        %570 = vmatpush.msra.mxu0 %v475
        %571 = vmatpush.msra.mxu0 %v473
        %572 = vmatpush.msra.mxu0 %v471
        %573 = vmatpush.msra.mxu0 %v469
        %574 = vmatpush.msra.mxu0 %v467
        %575 = vmatpush.msra.mxu0 %v465
        %576 = vmatpush.msra.mxu0 %v463
        %577 = vmatpush.msra.mxu0 %v461
        %578 = vmatpush.msra.mxu0 %v459
        %579 = vmatpush.msra.mxu0 %v457
        %580 = vmatpush.msra.mxu0 %v455
        %581 = vmatpush.msra.mxu0 %v453
        %582 = vmatpush.msra.mxu0 %v451
        %583 = vmatmul.f32.gmra.mxu0 %v416
        %v584 = vpop.f32.mrf.mxu0
        %v585 = vadd.f32 %v565, %v584
        %586 = vdwg.mxu0
        %587 = vmatpush.msra.mxu0 %v513
        %588 = vmatpush.msra.mxu0 %v511
        %589 = vmatpush.msra.mxu0 %v509
        %590 = vmatpush.msra.mxu0 %v507
        %591 = vmatpush.msra.mxu0 %v505
        %592 = vmatpush.msra.mxu0 %v503
        %593 = vmatpush.msra.mxu0 %v501
        %594 = vmatpush.msra.mxu0 %v499
        %595 = vmatpush.msra.mxu0 %v497
        %596 = vmatpush.msra.mxu0 %v495
        %597 = vmatpush.msra.mxu0 %v493
        %598 = vmatpush.msra.mxu0 %v491
        %599 = vmatpush.msra.mxu0 %v489
        %600 = vmatpush.msra.mxu0 %v487
        %601 = vmatpush.msra.mxu0 %v485
        %602 = vmatpush.msra.mxu0 %v483
        %603 = vmatmul.f32.gmra.mxu0 %v417
        %v604 = vpop.f32.mrf.mxu0
        %v605 = vadd.f32 %v585, %v604
        %606 = vdwg.mxu0
        %607 = vmatpush.msra.mxu0 %v545
        %608 = vmatpush.msra.mxu0 %v543
        %609 = vmatpush.msra.mxu0 %v541
        %610 = vmatpush.msra.mxu0 %v539
        %611 = vmatpush.msra.mxu0 %v537
        %612 = vmatpush.msra.mxu0 %v535
        %613 = vmatpush.msra.mxu0 %v533
        %614 = vmatpush.msra.mxu0 %v531
        %615 = vmatpush.msra.mxu0 %v529
        %616 = vmatpush.msra.mxu0 %v527
        %617 = vmatpush.msra.mxu0 %v525
        %618 = vmatpush.msra.mxu0 %v523
        %619 = vmatpush.msra.mxu0 %v521
        %620 = vmatpush.msra.mxu0 %v519
        %621 = vmatpush.msra.mxu0 %v517
        %622 = vmatpush.msra.mxu0 %v515
        %623 = vmatmul.f32.gmra.mxu0 %v418
        %v624 = vpop.f32.mrf.mxu0
        %v625 = vadd.f32 %v605, %v624
        %626 = vdwg.mxu0
        %627 = vmatpush.msra.mxu0 %v450
        %628 = vmatpush.msra.mxu0 %v448
        %629 = vmatpush.msra.mxu0 %v446
        %630 = vmatpush.msra.mxu0 %v444
        %631 = vmatpush.msra.mxu0 %v442
        %632 = vmatpush.msra.mxu0 %v440
        %633 = vmatpush.msra.mxu0 %v438
        %634 = vmatpush.msra.mxu0 %v436
        %635 = vmatpush.msra.mxu0 %v434
        %636 = vmatpush.msra.mxu0 %v432
        %637 = vmatpush.msra.mxu0 %v430
        %638 = vmatpush.msra.mxu0 %v428
        %639 = vmatpush.msra.mxu0 %v426
        %640 = vmatpush.msra.mxu0 %v424
        %641 = vmatpush.msra.mxu0 %v422
        %642 = vmatpush.msra.mxu0 %v420
        %643 = vmatmul.f32.gmra.mxu0 %v415
        %v644 = vpop.f32.mrf.mxu0
        %v645 = vadd.f32 0.0, %v644
        %646 = vdwg.mxu0
        %647 = vmatpush.msra.mxu0 %v482
        %648 = vmatpush.msra.mxu0 %v480
        %649 = vmatpush.msra.mxu0 %v478
        %650 = vmatpush.msra.mxu0 %v476
        %651 = vmatpush.msra.mxu0 %v474
        %652 = vmatpush.msra.mxu0 %v472
        %653 = vmatpush.msra.mxu0 %v470
        %654 = vmatpush.msra.mxu0 %v468
        %655 = vmatpush.msra.mxu0 %v466
        %656 = vmatpush.msra.mxu0 %v464
        %657 = vmatpush.msra.mxu0 %v462
        %658 = vmatpush.msra.mxu0 %v460
        %659 = vmatpush.msra.mxu0 %v458
        %660 = vmatpush.msra.mxu0 %v456
        %661 = vmatpush.msra.mxu0 %v454
        %662 = vmatpush.msra.mxu0 %v452
        %663 = vmatmul.f32.gmra.mxu0 %v416
        %v664 = vpop.f32.mrf.mxu0
        %v665 = vadd.f32 %v645, %v664
        %666 = vdwg.mxu0
        %667 = vmatpush.msra.mxu0 %v514
        %668 = vmatpush.msra.mxu0 %v512
        %669 = vmatpush.msra.mxu0 %v510
        %670 = vmatpush.msra.mxu0 %v508
        %671 = vmatpush.msra.mxu0 %v506
        %672 = vmatpush.msra.mxu0 %v504
        %673 = vmatpush.msra.mxu0 %v502
        %674 = vmatpush.msra.mxu0 %v500
        %675 = vmatpush.msra.mxu0 %v498
        %676 = vmatpush.msra.mxu0 %v496
        %677 = vmatpush.msra.mxu0 %v494
        %678 = vmatpush.msra.mxu0 %v492
        %679 = vmatpush.msra.mxu0 %v490
        %680 = vmatpush.msra.mxu0 %v488
        %681 = vmatpush.msra.mxu0 %v486
        %682 = vmatpush.msra.mxu0 %v484
        %683 = vmatmul.f32.gmra.mxu0 %v417
        %v684 = vpop.f32.mrf.mxu0
        %v685 = vadd.f32 %v665, %v684
        %686 = vdwg.mxu0
        %687 = vmatpush.msra.mxu0 %v546
        %688 = vmatpush.msra.mxu0 %v544
        %689 = vmatpush.msra.mxu0 %v542
        %690 = vmatpush.msra.mxu0 %v540
        %691 = vmatpush.msra.mxu0 %v538
        %692 = vmatpush.msra.mxu0 %v536
        %693 = vmatpush.msra.mxu0 %v534
        %694 = vmatpush.msra.mxu0 %v532
        %695 = vmatpush.msra.mxu0 %v530
        %696 = vmatpush.msra.mxu0 %v528
        %697 = vmatpush.msra.mxu0 %v526
        %698 = vmatpush.msra.mxu0 %v524
        %699 = vmatpush.msra.mxu0 %v522
        %700 = vmatpush.msra.mxu0 %v520
        %701 = vmatpush.msra.mxu0 %v518
        %702 = vmatpush.msra.mxu0 %v516
        %703 = vmatmul.f32.gmra.mxu0 %v418
        %v704 = vpop.f32.mrf.mxu0
        %v705 = vadd.f32 %v685, %v704
        %706 = vdwg.mxu0
        %v707 = vrot.slane %v625, 4
        %v708 = vadd.f32 %v625, %v707
        %v709 = vrot.slane %v708, 2
        %v710 = vadd.f32 %v708, %v709
        %v711 = vrot.slane %v710, 1
        %v712 = vadd.f32 %v710, %v711
        %v713 = vrot.slane %v705, 4
        %v714 = vadd.f32 %v705, %v713
        %v715 = vrot.slane %v714, 2
        %v716 = vadd.f32 %v714, %v715
        %v717 = vrot.slane %v716, 1
        %v718 = vadd.f32 %v716, %v717
        %v719 = vrcp.pop 8.0
        %v720 = vmul.f32 8.0, %v719
        %v721 = vsub.f32 1.0, %v720
        %v722 = vmul.f32 %v719, %v721
        %v723 = vadd.f32 %v719, %v722
        %vm724 = vweird.f32 %v719
        %v725 = vsel %vm724, %v719, %v723
        %v726 = vmul.f32 %v712, %v725
        %v727 = vmul.f32 %v718, %v725
        %v728 = vmul.f32 %v625, %v625
        %v729 = vmul.f32 %v705, %v705
        %v730 = vrot.slane %v728, 4
        %v731 = vadd.f32 %v728, %v730
        %v732 = vrot.slane %v731, 2
        %v733 = vadd.f32 %v731, %v732
        %v734 = vrot.slane %v733, 1
        %v735 = vadd.f32 %v733, %v734
        %v736 = vrot.slane %v729, 4
        %v737 = vadd.f32 %v729, %v736
        %v738 = vrot.slane %v737, 2
        %v739 = vadd.f32 %v737, %v738
        %v740 = vrot.slane %v739, 1
        %v741 = vadd.f32 %v739, %v740
        %v742 = vmul.f32 %v735, %v725
        %v743 = vmul.f32 %v741, %v725
        %v744 = vmul.f32 %v726, %v726
        %v745 = vmul.f32 %v727, %v727
        %v746 = vsub.f32 %v742, %v744
        %v747 = vsub.f32 %v743, %v745
        %v748 = vmax.f32 %v746, 0.0
        %v749 = vmax.f32 %v747, 0.0
        %v750 = vld [vmem:[%s340] sm:$0x3]
        %v751 = vadd.f32 %v748, 1e-05
        %v752 = vadd.f32 %v749, 1e-05
        %v753 = vrsqrt.pop %v751
        %v754 = vmul.f32 %v753, %v751
        %v755 = vmul.f32 %v754, %v753
        %v756 = vmul.f32 0.5, %v755
        %v757 = vsub.f32 1.5, %v756
        %v758 = vmul.f32 %v753, %v757
        %vm759 = vweird.f32 %v751
        %vm760 = vweird.f32 %v753
        %vm761 = vmor %vm759, %vm760
        %v762 = vsel %vm761, %v753, %v758
        %v763 = vrsqrt.pop %v752
        %v764 = vmul.f32 %v763, %v752
        %v765 = vmul.f32 %v764, %v763
        %v766 = vmul.f32 0.5, %v765
        %v767 = vsub.f32 1.5, %v766
        %v768 = vmul.f32 %v763, %v767
        %vm769 = vweird.f32 %v752
        %vm770 = vweird.f32 %v763
        %vm771 = vmor %vm769, %vm770
        %v772 = vsel %vm771, %v763, %v768
        %v775 = vrot.slane %v772, 7
        %vm776 = vcmask 1040384
        %v777 = vsel %vm776, %v762, %v775
        %v779 = vmul.f32 %v750, %v777
        %v780 = vld [vmem:[%s350] sm:$0x3]
        %v782 = vperm.slane %v779, 0
        %v783 = vperm.slane %v779, 1
        %v786 = vmul.f32 %v726, %v782
        %v787 = vmul.f32 %v727, %v783
        %v790 = vrot.slane %v787, 7
        %v791 = vsel %vm776, %v786, %v790
        %v793 = vsub.f32 %v780, %v791
        %v794 = vmul.f32 %v625, %v782
        %v795 = vmul.f32 %v705, %v783
        %v797 = vperm.slane %v793, 0
        %v798 = vperm.slane %v793, 1
        %v801 = vadd.f32 %v794, %v797
        %v802 = vadd.f32 %v795, %v798
        %v803 = vmax.f32 %v801, 0.0
        %v804 = vmax.f32 %v802, 0.0
        %v805 = vld [vmem:[#allocation2] sm:$0xff]
        %v806 = vld [vmem:[#allocation2 + $0x8] sm:$0xff]
        %v807 = vld [vmem:[%s360] sm:$0xff]
        %v808 = vld [vmem:[%s360 + $0x8] sm:$0xff]
        %v809 = vld [vmem:[%s360 + $0x10] sm:$0xff]
        %v810 = vld [vmem:[%s360 + $0x18] sm:$0xff]
        %v811 = vld [vmem:[%s360 + $0x20] sm:$0xff]
        %v812 = vld [vmem:[%s360 + $0x28] sm:$0xff]
        %v813 = vld [vmem:[%s360 + $0x30] sm:$0xff]
        %v814 = vld [vmem:[%s360 + $0x38] sm:$0xff]
        %v815 = vld [vmem:[%s360 + $0x40] sm:$0xff]
        %v816 = vld [vmem:[%s360 + $0x48] sm:$0xff]
        %v817 = vld [vmem:[%s360 + $0x50] sm:$0xff]
        %v818 = vld [vmem:[%s360 + $0x58] sm:$0xff]
        %v819 = vld [vmem:[%s360 + $0x60] sm:$0xff]
        %v820 = vld [vmem:[%s360 + $0x68] sm:$0xff]
        %v821 = vld [vmem:[%s360 + $0x70] sm:$0xff]
        %v822 = vld [vmem:[%s360 + $0x78] sm:$0xff]
        %v823 = vld [vmem:[%s360 + $0x80] sm:$0xff]
        %v824 = vld [vmem:[%s360 + $0x88] sm:$0xff]
        %v825 = vld [vmem:[%s360 + $0x90] sm:$0xff]
        %v826 = vld [vmem:[%s360 + $0x98] sm:$0xff]
        %v827 = vld [vmem:[%s360 + $0xa0] sm:$0xff]
        %v828 = vld [vmem:[%s360 + $0xa8] sm:$0xff]
        %v829 = vld [vmem:[%s360 + $0xb0] sm:$0xff]
        %v830 = vld [vmem:[%s360 + $0xb8] sm:$0xff]
        %v831 = vld [vmem:[%s360 + $0xc0] sm:$0xff]
        %v832 = vld [vmem:[%s360 + $0xc8] sm:$0xff]
        %v833 = vld [vmem:[%s360 + $0xd0] sm:$0xff]
        %v834 = vld [vmem:[%s360 + $0xd8] sm:$0xff]
        %v835 = vld [vmem:[%s360 + $0xe0] sm:$0xff]
        %v836 = vld [vmem:[%s360 + $0xe8] sm:$0xff]
        %v837 = vld [vmem:[%s360 + $0xf0] sm:$0xff]
        %v838 = vld [vmem:[%s360 + $0xf8] sm:$0xff]
        %v839 = vld [vmem:[%s360 + $0x100] sm:$0xff]
        %v840 = vld [vmem:[%s360 + $0x108] sm:$0xff]
        %v841 = vld [vmem:[%s360 + $0x110] sm:$0xff]
        %v842 = vld [vmem:[%s360 + $0x118] sm:$0xff]
        %v843 = vld [vmem:[%s360 + $0x120] sm:$0xff]
        %v844 = vld [vmem:[%s360 + $0x128] sm:$0xff]
        %v845 = vld [vmem:[%s360 + $0x130] sm:$0xff]
        %v846 = vld [vmem:[%s360 + $0x138] sm:$0xff]
        %v847 = vld [vmem:[%s360 + $0x140] sm:$0xff]
        %v848 = vld [vmem:[%s360 + $0x148] sm:$0xff]
        %v849 = vld [vmem:[%s360 + $0x150] sm:$0xff]
        %v850 = vld [vmem:[%s360 + $0x158] sm:$0xff]
        %v851 = vld [vmem:[%s360 + $0x160] sm:$0xff]
        %v852 = vld [vmem:[%s360 + $0x168] sm:$0xff]
        %v853 = vld [vmem:[%s360 + $0x170] sm:$0xff]
        %v854 = vld [vmem:[%s360 + $0x178] sm:$0xff]
        %v855 = vld [vmem:[%s360 + $0x180] sm:$0xff]
        %v856 = vld [vmem:[%s360 + $0x188] sm:$0xff]
        %v857 = vld [vmem:[%s360 + $0x190] sm:$0xff]
        %v858 = vld [vmem:[%s360 + $0x198] sm:$0xff]
        %v859 = vld [vmem:[%s360 + $0x1a0] sm:$0xff]
        %v860 = vld [vmem:[%s360 + $0x1a8] sm:$0xff]
        %v861 = vld [vmem:[%s360 + $0x1b0] sm:$0xff]
        %v862 = vld [vmem:[%s360 + $0x1b8] sm:$0xff]
        %v863 = vld [vmem:[%s360 + $0x1c0] sm:$0xff]
        %v864 = vld [vmem:[%s360 + $0x1c8] sm:$0xff]
        %v865 = vld [vmem:[%s360 + $0x1d0] sm:$0xff]
        %v866 = vld [vmem:[%s360 + $0x1d8] sm:$0xff]
        %v867 = vld [vmem:[%s360 + $0x1e0] sm:$0xff]
        %v868 = vld [vmem:[%s360 + $0x1e8] sm:$0xff]
        %v869 = vld [vmem:[%s360 + $0x1f0] sm:$0xff]
        %v870 = vld [vmem:[%s360 + $0x1f8] sm:$0xff]
        %871 = vmatpush.msra.mxu0 %v837
        %872 = vmatpush.msra.mxu0 %v835
        %873 = vmatpush.msra.mxu0 %v833
        %874 = vmatpush.msra.mxu0 %v831
        %875 = vmatpush.msra.mxu0 %v829
        %876 = vmatpush.msra.mxu0 %v827
        %877 = vmatpush.msra.mxu0 %v825
        %878 = vmatpush.msra.mxu0 %v823
        %879 = vmatpush.msra.mxu0 %v821
        %880 = vmatpush.msra.mxu0 %v819
        %881 = vmatpush.msra.mxu0 %v817
        %882 = vmatpush.msra.mxu0 %v815
        %883 = vmatpush.msra.mxu0 %v813
        %884 = vmatpush.msra.mxu0 %v811
        %885 = vmatpush.msra.mxu0 %v809
        %886 = vmatpush.msra.mxu0 %v807
        %887 = vmatmul.f32.gmra.mxu0 %v803
        %v888 = vpop.f32.mrf.mxu0
        %v889 = vadd.f32 0.0, %v888
        %890 = vdwg.mxu0
        %891 = vmatpush.msra.mxu0 %v869
        %892 = vmatpush.msra.mxu0 %v867
        %893 = vmatpush.msra.mxu0 %v865
        %894 = vmatpush.msra.mxu0 %v863
        %895 = vmatpush.msra.mxu0 %v861
        %896 = vmatpush.msra.mxu0 %v859
        %897 = vmatpush.msra.mxu0 %v857
        %898 = vmatpush.msra.mxu0 %v855
        %899 = vmatpush.msra.mxu0 %v853
        %900 = vmatpush.msra.mxu0 %v851
        %901 = vmatpush.msra.mxu0 %v849
        %902 = vmatpush.msra.mxu0 %v847
        %903 = vmatpush.msra.mxu0 %v845
        %904 = vmatpush.msra.mxu0 %v843
        %905 = vmatpush.msra.mxu0 %v841
        %906 = vmatpush.msra.mxu0 %v839
        %907 = vmatmul.f32.gmra.mxu0 %v804
        %v908 = vpop.f32.mrf.mxu0
        %v909 = vadd.f32 %v889, %v908
        %910 = vdwg.mxu0
        %911 = vmatpush.msra.mxu0 %v838
        %912 = vmatpush.msra.mxu0 %v836
        %913 = vmatpush.msra.mxu0 %v834
        %914 = vmatpush.msra.mxu0 %v832
        %915 = vmatpush.msra.mxu0 %v830
        %916 = vmatpush.msra.mxu0 %v828
        %917 = vmatpush.msra.mxu0 %v826
        %918 = vmatpush.msra.mxu0 %v824
        %919 = vmatpush.msra.mxu0 %v822
        %920 = vmatpush.msra.mxu0 %v820
        %921 = vmatpush.msra.mxu0 %v818
        %922 = vmatpush.msra.mxu0 %v816
        %923 = vmatpush.msra.mxu0 %v814
        %924 = vmatpush.msra.mxu0 %v812
        %925 = vmatpush.msra.mxu0 %v810
        %926 = vmatpush.msra.mxu0 %v808
        %927 = vmatmul.f32.gmra.mxu0 %v803
        %v928 = vpop.f32.mrf.mxu0
        %v929 = vadd.f32 0.0, %v928
        %930 = vdwg.mxu0
        %931 = vmatpush.msra.mxu0 %v870
        %932 = vmatpush.msra.mxu0 %v868
        %933 = vmatpush.msra.mxu0 %v866
        %934 = vmatpush.msra.mxu0 %v864
        %935 = vmatpush.msra.mxu0 %v862
        %936 = vmatpush.msra.mxu0 %v860
        %937 = vmatpush.msra.mxu0 %v858
        %938 = vmatpush.msra.mxu0 %v856
        %939 = vmatpush.msra.mxu0 %v854
        %940 = vmatpush.msra.mxu0 %v852
        %941 = vmatpush.msra.mxu0 %v850
        %942 = vmatpush.msra.mxu0 %v848
        %943 = vmatpush.msra.mxu0 %v846
        %944 = vmatpush.msra.mxu0 %v844
        %945 = vmatpush.msra.mxu0 %v842
        %946 = vmatpush.msra.mxu0 %v840
        %947 = vmatmul.f32.gmra.mxu0 %v804
        %v948 = vpop.f32.mrf.mxu0
        %v949 = vadd.f32 %v929, %v948
        %950 = vdwg.mxu0
        %v951 = vadd.f32 %v805, %v909
        %v952 = vadd.f32 %v806, %v949
        %953 = vst [vmem:[#allocation2] sm:$0xff] %v951
        %954 = vst [vmem:[#allocation2 + $0x8] sm:$0xff] %v952
        %p955 = scmp.eq.s32.totalorder %s26, 3
        // Predicated region
        $region73: #{tpu_custom_call.1} parent=43 // pred_check
          %p956 = pneg %p955
        $region74: #{tpu_custom_call.1} parent=43 // pred_check_branch
          %958 = sbr.rel (%p956) target = $region76
        $region75: #{tpu_custom_call.1} parent=43 // pred_region
          %v959 = vld [vmem:[#allocation2] sm:$0xff]
          %v960 = vld [vmem:[#allocation2 + $0x8] sm:$0xff]
          %v961 = vld [vmem:[#allocation12] sm:$0x3]
          %v963 = vperm.slane %v961, 0
          %v964 = vperm.slane %v961, 1
          %v967 = vadd.f32 %v959, %v963
          %v968 = vadd.f32 %v960, %v964
          %969 = vst [vmem:[#allocation14] sm:$0xff] %v967
          %970 = vst [vmem:[#allocation14 + $0x8] sm:$0xff] %v968
        $region76: #{tpu_custom_call.1} parent=43 // pred_fallthru
          _
        // Predicated region
        $region77: #{tpu_custom_call.1} parent=43 // pred_check
          %p971 = pneg %p185
        $region78: #{tpu_custom_call.1} parent=43 // pred_check_branch
          %973 = sbr.rel (%p971) target = $region80
        $region79: #{tpu_custom_call.1} parent=43 // pred_region
          %975 = vsyncadd [#allocation5], 0
          %s977 = sshll.u32 [#allocation14], 4
          %s978 = int_to_ptr.vmem [resolvable:$true] %s977
          %s979 = sshll.u32 %s6, 4
          %s980 = int_to_ptr.hbm [resolvable:$true] %s979
          %982 = dma.vmem_to_hbm [thread:$0]  %s978, 256, %s980, [#allocation5]
        $region80: #{tpu_custom_call.1} parent=43 // pred_fallthru
          _
        // Predicated region
        $region81: #{tpu_custom_call.1} parent=43 // pred_check
          %p983 = pneg %p185
        $region82: #{tpu_custom_call.1} parent=43 // pred_check_branch
          %985 = sbr.rel (%p983) target = $region84
        $region83: #{tpu_custom_call.1} parent=43 // pred_region
          %987 = dma.done [#allocation5], 256
        $region84: #{tpu_custom_call.1} parent=43 // pred_fallthru
          _
      $region44: #{tpu_custom_call.1} parent=5 // pred_fallthru
        _
      %p988 = scmp.le.s32.totalorder 2, %s21
      // Predicated region
      $region85: #{tpu_custom_call.1} parent=5 // pred_check
        %p989 = pneg %p988
      $region86: #{tpu_custom_call.1} parent=5 // pred_check_branch
        %991 = sbr.rel (%p989) target = $region88
      $region87: #{tpu_custom_call.1} parent=5 // pred_region
        %s992 = ssub.s32 %s21, 2
      $region88: #{tpu_custom_call.1} parent=5 // pred_fallthru
        _
    $region6: #{tpu_custom_call.1} parent=1 // loop_footer
      %s25 = sadd.s32 1, %s21
    $region7: #{tpu_custom_call.1} parent=1 // loop_footer_branch
      %20 = sbr.rel target = $region3
    $region8: #{tpu_custom_call.1} parent=1 // loop_exit
      _
    %993 = vsyncpa [#allocation4], 1
    %s994 = scalar_lea.sflag [#allocation4], 1
    %995 = vsyncpa %s994, 1
    %996 = vsyncpa [#allocation7], 1
    %s997 = scalar_lea.sflag [#allocation7], 1
    %998 = vsyncpa %s997, 1
    %999 = vsyncpa [#allocation10], 1
    %s1000 = scalar_lea.sflag [#allocation10], 1
    %1001 = vsyncpa %s1000, 1
    %1002 = vsyncpa [#allocation13], 1
    %1003 = vsyncpa [#allocation5], 1
    %s1004 = scalar_lea.sflag [#allocation5], 1
    %1005 = vsyncpa %s1004, 1

</llo_original>
